<compile_context>
chip_gen: v5e
topology: v5e:2x2
jax: 0.10.0
libtpu: 0.0.40
codegen_flags: <defaults>
</compile_context>

<pallas_src>
import jax
import jax.numpy as jnp
from jax.experimental import pallas as pl
from jax.experimental.pallas import tpu as pltpu


def _round_up(x, m):
    return ((x + m - 1) // m) * m


def _mlp_kernel(x_ref, wfc_ref, bfc_ref, wproj_ref, bproj_ref, o_ref, acc_ref):
    # Grid: (M // tm, H // th); axis 1 (hidden dim) is the reduction axis.
    j = pl.program_id(1)

    @pl.when(j == 0)
    def _():
        acc_ref[...] = jnp.zeros_like(acc_ref)

    # c_fc slice: (tm, C) @ (C, th) on the MXU, bf16 inputs, f32 accumulation.
    x = x_ref[...].astype(wfc_ref.dtype)
    h = jnp.dot(x, wfc_ref[...], preferred_element_type=jnp.float32)
    h = h + bfc_ref[...].astype(jnp.float32)

    # GELU, tanh approximation (torch.nn.GELU(approximate='tanh')), kept in f32.
    c0 = jnp.float32(0.7978845608028654)  # sqrt(2/pi)
    c1 = jnp.float32(0.044715)
    g = 0.5 * h * (1.0 + jnp.tanh(c0 * (h + c1 * h * h * h)))

    # Partial c_proj contribution: (tm, th) @ (th, C), accumulated in f32.
    acc_ref[...] += jnp.dot(g.astype(wproj_ref.dtype), wproj_ref[...],
                            preferred_element_type=jnp.float32)

    @pl.when(j == pl.num_programs(1) - 1)
    def _():
        o_ref[...] = (acc_ref[...] + bproj_ref[...].astype(jnp.float32)).astype(o_ref.dtype)


def mlp_pallas(x, w_fc, b_fc, w_proj, b_proj, *, tm=512, th=512):
    """GPT-2 MLP: GELU_tanh(x @ w_fc + b_fc) @ w_proj + b_proj.

    x: [B, T, C]; w_fc: [C, H]; b_fc: [H]; w_proj: [H, C]; b_proj: [C]  (H = 4C).
    """
    B, T, C = x.shape
    H = w_fc.shape[1]
    M = B * T

    # Row tile: multiple of 8 sublanes (ideally of the MXU dim), clamped to the problem.
    tm = min(tm, _round_up(M, 8))
    tm = _round_up(tm, 8)
    Mp = _round_up(M, tm)          # pad rows instead of degrading to tm = M

    # Hidden tile: must divide H and be lane-dense (multiple of 128), else use full H.
    th = min(th, H)
    if H % th != 0 or th % 128 != 0:
        th = H
    n_h = H // th

    x2 = x.reshape(M, C)
    if Mp != M:
        x2 = jnp.pad(x2, ((0, Mp - M), (0, 0)))

    # bf16 weights -> half the HBM/VMEM traffic and ~2x MXU rate; f32 accumulation.
    w_fc_b = w_fc.astype(jnp.bfloat16)
    w_proj_b = w_proj.astype(jnp.bfloat16)
    b_fc2 = b_fc.reshape(1, H).astype(jnp.float32)
    b_proj2 = b_proj.reshape(1, C).astype(jnp.float32)

    grid = (Mp // tm, n_h)

    # Rough VMEM budget: double-buffered inputs/outputs + accumulator + GELU tile.
    xb = x2.dtype.itemsize
    ob = jnp.dtype(x.dtype).itemsize
    vmem_bytes = (
        2 * tm * C * xb            # x tile (double-buffered)
        + 2 * C * th * 2           # w_fc slice (bf16)
        + 2 * th * C * 2           # w_proj slice (bf16)
        + 2 * (th + C) * 4         # bias slices
        + 2 * tm * C * ob          # output tile
        + tm * C * 4               # accumulator scratch
        + 2 * tm * th * 4          # GELU intermediate headroom
    )
    vmem_limit = int(min(64 * 1024 * 1024, max(2 * vmem_bytes, 16 * 1024 * 1024)))

    cost = pl.CostEstimate(
        flops=2 * 2 * Mp * C * H,                       # two matmuls
        transcendentals=Mp * H,                         # tanh in GELU
        bytes_accessed=(Mp * C * (xb + ob)              # x in + out
                        + 2 * C * H * 2                 # both weight matrices (bf16)
                        + (H + C) * 4),                 # biases
    )

    out2 = pl.pallas_call(
        _mlp_kernel,
        out_shape=jax.ShapeDtypeStruct((Mp, C), x.dtype),
        grid_spec=pltpu.PrefetchScalarGridSpec(
            num_scalar_prefetch=0,
            grid=grid,
            in_specs=[
                pl.BlockSpec((tm, C), lambda i, j: (i, 0)),   # x row tile (constant over j)
                pl.BlockSpec((C, th), lambda i, j: (0, j)),   # w_fc hidden slice
                pl.BlockSpec((1, th), lambda i, j: (0, j)),   # b_fc hidden slice
                pl.BlockSpec((th, C), lambda i, j: (j, 0)),   # w_proj hidden slice
                pl.BlockSpec((1, C), lambda i, j: (0, 0)),    # b_proj (constant)
            ],
            out_specs=pl.BlockSpec((tm, C), lambda i, j: (i, 0)),
            scratch_shapes=[pltpu.VMEM((tm, C), jnp.float32)],
        ),
        compiler_params=pltpu.CompilerParams(
            dimension_semantics=("parallel", "arbitrary"),
            vmem_limit_bytes=vmem_limit,
        ),
        cost_estimate=cost,
    )(x2, w_fc_b, b_fc2, w_proj_b, b_proj2)

    if Mp != M:
        out2 = out2[:M]
    return out2.reshape(B, T, C)


def _reference_mlp(x, w_fc, b_fc, w_proj, b_proj):
    h = jnp.einsum("btc,ch->bth", x, w_fc) + b_fc
    c0 = 0.7978845608028654
    g = 0.5 * h * (1.0 + jnp.tanh(c0 * (h + 0.044715 * h ** 3)))
    return jnp.einsum("bth,hc->btc", g, w_proj) + b_proj


if __name__ == "__main__":
    # Small but lane-dense GPT-2-style config: n_embd = 128, hidden = 4 * 128 = 512.
    B, T, C = 2, 64, 128
    H = 4 * C

    key = jax.random.PRNGKey(0)
    kx, kw1, kb1, kw2, kb2 = jax.random.split(key, 5)

    x = jax.random.normal(kx, (B, T, C), dtype=jnp.float32)
    # Deterministic synthetic params (GPT-2-like init scale), stored as [in, out].
    w_fc = jax.random.normal(kw1, (C, H), dtype=jnp.float32) * 0.02
    b_fc = jax.random.normal(kb1, (H,), dtype=jnp.float32) * 0.01
    w_proj = jax.random.normal(kw2, (H, C), dtype=jnp.float32) * 0.02
    b_proj = jax.random.normal(kb2, (C,), dtype=jnp.float32) * 0.01

    # th=256 exercises the hidden-dim reduction axis (2 steps) even at this small size.
    out = mlp_pallas(x, w_fc, b_fc, w_proj, b_proj, th=256)
    jax.block_until_ready(out)

    ref = _reference_mlp(x, w_fc, b_fc, w_proj, b_proj)
    assert out.shape == (B, T, C)
    # bf16 weights + f32 accumulation vs pure-f32 reference -> loosened tolerance.
    assert jnp.allclose(out, ref, atol=1e-2, rtol=1e-2), (
        float(jnp.max(jnp.abs(out - ref))))

    print("KERNEL_OK")
</pallas_src>

<mosaic_0001>
module attributes {stable_mosaic.version = 11 : i64} {
  func.func @_mlp_kernel(%arg0: i32, %arg1: i32, %arg2: memref<128x128xf32, #tpu.memory_space<vmem>>, %arg3: memref<128x256xbf16, #tpu.memory_space<vmem>>, %arg4: memref<1x256xf32, #tpu.memory_space<vmem>>, %arg5: memref<256x128xbf16, #tpu.memory_space<vmem>>, %arg6: memref<1x128xf32, #tpu.memory_space<vmem>>, %arg7: memref<128x128xf32, #tpu.memory_space<vmem>>, %arg8: memref<128x128xf32, #tpu.memory_space<vmem>>) attributes {dimension_semantics = [#tpu.dimension_semantics<parallel>, #tpu.dimension_semantics<arbitrary>], iteration_bounds = array<i64: 1, 2>, scalar_prefetch = 0 : i64, scratch_operands = 1 : i64, tpu.core_type = #tpu.core_type<tc>, window_params = [{transform_indices = @transform_0, window_bounds = array<i64: 128, 128>}, {transform_indices = @transform_1, window_bounds = array<i64: 128, 256>}, {transform_indices = @transform_2, window_bounds = array<i64: 1, 256>}, {transform_indices = @transform_3, window_bounds = array<i64: 256, 128>}, {pipeline_mode = #tpu.pipeline_mode<synchronous>, transform_indices = @transform_4, window_bounds = array<i64: 1, 128>}, {transform_indices = @transform_5, window_bounds = array<i64: 128, 128>}]} {
    %c0_i32 = arith.constant 0 : i32
    %0 = arith.cmpi eq, %arg1, %c0_i32 : i32
    %1 = arith.extui %0 : i1 to i32
    %c0_i32_0 = arith.constant 0 : i32
    %2 = arith.cmpi ne, %1, %c0_i32_0 : i32
    scf.if %2 {
      %cst_18 = arith.constant 0.000000e+00 : f32
      %32 = vector.broadcast %cst_18 : f32 to vector<128x128xf32>
      %c0_19 = arith.constant 0 : index
      %c0_20 = arith.constant 0 : index
      %33 = vector.load %arg8[%c0_19, %c0_20] : memref<128x128xf32, #tpu.memory_space<vmem>>, vector<128x128xf32>
      tpu.vector_store %arg8[%c0_19, %c0_20], %32 {strides = array<i32>} : memref<128x128xf32, #tpu.memory_space<vmem>>, vector<128x128xf32>,
    } else {
    }
    %c0 = arith.constant 0 : index
    %c0_1 = arith.constant 0 : index
    %3 = vector.load %arg2[%c0, %c0_1] : memref<128x128xf32, #tpu.memory_space<vmem>>, vector<128x128xf32>
    %4 = arith.truncf %3 : vector<128x128xf32> to vector<128x128xbf16>
    %c0_2 = arith.constant 0 : index
    %c0_3 = arith.constant 0 : index
    %5 = vector.load %arg3[%c0_2, %c0_3] : memref<128x256xbf16, #tpu.memory_space<vmem>>, vector<128x256xbf16>
    %cst = arith.constant dense<0.000000e+00> : vector<128x256xf32>
    %6 = tpu.matmul %4, %5, %cst {dimension_numbers = #tpu.dot_dimension_numbers<[1], [0], [0], [1], [0, 0, 1, 1], [], []>} : vector<128x128xbf16>, vector<128x256xbf16>, vector<128x256xf32> -> vector<128x256xf32>
    %c0_4 = arith.constant 0 : index
    %c0_5 = arith.constant 0 : index
    %7 = vector.load %arg4[%c0_4, %c0_5] : memref<1x256xf32, #tpu.memory_space<vmem>>, vector<1x256xf32>
    %8 = vector.broadcast %7 : vector<1x256xf32> to vector<128x256xf32>
    %9 = arith.addf %6, %8 : vector<128x256xf32>
    %cst_6 = arith.constant 5.000000e-01 : f32
    %10 = vector.broadcast %cst_6 : f32 to vector<128x256xf32>
    %11 = arith.mulf %10, %9 : vector<128x256xf32>
    %cst_7 = arith.constant 4.471500e-02 : f32
    %12 = vector.broadcast %cst_7 : f32 to vector<128x256xf32>
    %13 = arith.mulf %12, %9 : vector<128x256xf32>
    %14 = arith.mulf %13, %9 : vector<128x256xf32>
    %15 = arith.mulf %14, %9 : vector<128x256xf32>
    %16 = arith.addf %9, %15 : vector<128x256xf32>
    %cst_8 = arith.constant 0.797884583 : f32
    %17 = vector.broadcast %cst_8 : f32 to vector<128x256xf32>
    %18 = arith.mulf %17, %16 : vector<128x256xf32>
    %19 = math.tanh %18 : vector<128x256xf32>
    %cst_9 = arith.constant 1.000000e+00 : f32
    %20 = vector.broadcast %cst_9 : f32 to vector<128x256xf32>
    %21 = arith.addf %20, %19 : vector<128x256xf32>
    %22 = arith.mulf %11, %21 : vector<128x256xf32>
    %c0_10 = arith.constant 0 : index
    %c0_11 = arith.constant 0 : index
    %23 = vector.load %arg8[%c0_10, %c0_11] : memref<128x128xf32, #tpu.memory_space<vmem>>, vector<128x128xf32>
    %24 = arith.truncf %22 : vector<128x256xf32> to vector<128x256xbf16>
    %c0_12 = arith.constant 0 : index
    %c0_13 = arith.constant 0 : index
    %25 = vector.load %arg5[%c0_12, %c0_13] : memref<256x128xbf16, #tpu.memory_space<vmem>>, vector<256x128xbf16>
    %cst_14 = arith.constant dense<0.000000e+00> : vector<128x128xf32>
    %26 = tpu.matmul %24, %25, %cst_14 {dimension_numbers = #tpu.dot_dimension_numbers<[1], [0], [0], [1], [0, 0, 1, 1], [], []>} : vector<128x256xbf16>, vector<256x128xbf16>, vector<128x128xf32> -> vector<128x128xf32>
    %27 = arith.addf %23, %26 : vector<128x128xf32>
    %c0_15 = arith.constant 0 : index
    %c0_16 = arith.constant 0 : index
    %28 = vector.load %arg8[%c0_15, %c0_16] : memref<128x128xf32, #tpu.memory_space<vmem>>, vector<128x128xf32>
    tpu.vector_store %arg8[%c0_15, %c0_16], %27 {strides = array<i32>} : memref<128x128xf32, #tpu.memory_space<vmem>>, vector<128x128xf32>,
    %c1_i32 = arith.constant 1 : i32
    %29 = arith.cmpi eq, %arg1, %c1_i32 : i32
    %30 = arith.extui %29 : i1 to i32
    %c0_i32_17 = arith.constant 0 : i32
    %31 = arith.cmpi ne, %30, %c0_i32_17 : i32
    scf.if %31 {
      %c0_18 = arith.constant 0 : index
      %c0_19 = arith.constant 0 : index
      %32 = vector.load %arg8[%c0_18, %c0_19] : memref<128x128xf32, #tpu.memory_space<vmem>>, vector<128x128xf32>
      %c0_20 = arith.constant 0 : index
      %c0_21 = arith.constant 0 : index
      %33 = vector.load %arg6[%c0_20, %c0_21] : memref<1x128xf32, #tpu.memory_space<vmem>>, vector<1x128xf32>
      %34 = vector.broadcast %33 : vector<1x128xf32> to vector<128x128xf32>
      %35 = arith.addf %32, %34 : vector<128x128xf32>
      %c0_22 = arith.constant 0 : index
      %c0_23 = arith.constant 0 : index
      %36 = vector.load %arg7[%c0_22, %c0_23] : memref<128x128xf32, #tpu.memory_space<vmem>>, vector<128x128xf32>
      tpu.vector_store %arg7[%c0_22, %c0_23], %35 {strides = array<i32>} : memref<128x128xf32, #tpu.memory_space<vmem>>, vector<128x128xf32>,
    } else {
    }
    return
  }
  func.func @transform_0(%arg0: i32, %arg1: i32) -> (i32, i32) {
    %c0_i32 = arith.constant 0 : i32
    %c0_i32_0 = arith.constant 0 : i32
    return %arg0, %c0_i32 : i32, i32
  }
  func.func @transform_1(%arg0: i32, %arg1: i32) -> (i32, i32) {
    %c0_i32 = arith.constant 0 : i32
    %c0_i32_0 = arith.constant 0 : i32
    return %c0_i32, %arg1 : i32, i32
  }
  func.func @transform_2(%arg0: i32, %arg1: i32) -> (i32, i32) {
    %c0_i32 = arith.constant 0 : i32
    %c0_i32_0 = arith.constant 0 : i32
    return %c0_i32, %arg1 : i32, i32
  }
  func.func @transform_3(%arg0: i32, %arg1: i32) -> (i32, i32) {
    %c0_i32 = arith.constant 0 : i32
    %c0_i32_0 = arith.constant 0 : i32
    return %arg1, %c0_i32 : i32, i32
  }
  func.func @transform_4(%arg0: i32, %arg1: i32) -> (i32, i32) {
    %c0_i32 = arith.constant 0 : i32
    %c0_i32_0 = arith.constant 0 : i32
    %c0_i32_1 = arith.constant 0 : i32
    return %c0_i32, %c0_i32_0 : i32, i32
  }
  func.func @transform_5(%arg0: i32, %arg1: i32) -> (i32, i32) {
    %c0_i32 = arith.constant 0 : i32
    %c0_i32_0 = arith.constant 0 : i32
    return %arg0, %c0_i32 : i32, i32
  }
}

</mosaic_0001>

<llo_original>
// kernel: tpu_custom_call.1
$region0: #{tpu_custom_call.1}
  #allocation0 [shape = 'u32[]', space=smem, size = 0x4, offset = 0x4, fixed_abs, tag = 'smem constant byte address 0x4 - core index']
  #allocation1 [shape = 'u32[72,128]{1,0:T(1,128)}', space=vmem, size = 0x9000, scoped, tag = 'internal scratch']
  #allocation2 [shape = 'f32[128,128]{1,0:T(8,128)}', space=vmem, size = 0x10000, scoped, tag = 'scratch operand']
  %s0 = inlined_call_operand.hbm [shape: f32[128,128], index: 0, kind: input, shape index: {}]
  %s1 = inlined_call_operand.hbm [shape: bf16[128,512], index: 1, kind: input, shape index: {}]
  %s2 = inlined_call_operand.hbm [shape: f32[1,512], index: 2, kind: input, shape index: {}]
  %s3 = inlined_call_operand.hbm [shape: bf16[512,128], index: 3, kind: input, shape index: {}]
  %s4 = inlined_call_operand.vmem [shape: f32[1,128], index: 4, kind: input, shape index: {}]
  %s5 = inlined_call_operand.hbm [shape: f32[128,128], index: 5, kind: output, shape index: {}]
  %s6 = sld [smem:[#allocation0]]
  $region77: #{tpu_custom_call.1} parent=0
    _
  %s8 = ssub.s32 1, %s6
  %s9 = scalar_select 0, %s8, %s6
  $region1: #{tpu_custom_call.1} parent=0
    #allocation3 [shape = 'u8[65536]{0}', space=vmem, size = 0x10000, scoped, tag = 'input window, operand 0, single buffered']
    #allocation4 [shape = 's32[2]{0}', space=sflag, size = 0x8, scoped, tag = 'scoped memory for tpu_custom_call.1']
    #allocation5 [shape = 's32[2]{0}', space=sflag, size = 0x8, scoped, tag = 'scoped memory for tpu_custom_call.1']
    #allocation6 [shape = 'u8[131072]{0}', space=vmem, size = 0x20000, scoped, tag = 'input window, operand 1']
    #allocation7 [shape = 's32[2]{0}', space=sflag, size = 0x8, scoped, tag = 'scoped memory for tpu_custom_call.1']
    #allocation8 [shape = 'u8[2048]{0}', space=vmem, size = 0x800, scoped, tag = 'input window, operand 2']
    #allocation9 [shape = 'u8[131072]{0}', space=vmem, size = 0x20000, scoped, tag = 'input window, operand 3']
    #allocation10 [shape = 's32[2]{0}', space=sflag, size = 0x8, scoped, tag = 'scoped memory for tpu_custom_call.1']
    #allocation11 [shape = 'u8[65536]{0}', space=vmem, size = 0x10000, scoped, tag = 'output window, operand 0, single buffered']
    %10 = vsyncpa [#allocation4], 0
    %11 = vsyncpa [#allocation7], 0
    %s12 = scalar_lea.sflag [#allocation7], 1
    %13 = vsyncpa %s12, 0
    %14 = vsyncpa [#allocation10], 0
    %s15 = scalar_lea.sflag [#allocation10], 1
    %16 = vsyncpa %s15, 0
    %17 = vsyncpa [#allocation5], 0
    loop: start=0, step=1, limit=4
    $region2: #{tpu_custom_call.1} parent=1 // loop_pre_header
      _
    $region3: #{tpu_custom_call.1} parent=1 // loop_header
      %s19 = sphi 0, %s23
      %p20 = scmp.ge.s32.totalorder %s19, 4
      %s26 = sphi 0, %s38
      %s27 = sphi 0, %s34
      %s28 = sphi 0, %s26
      %s29 = sphi 0, %s27
      %s30 = sphi 0, %s28
      %s31 = sphi 0, %s29
      %s41 = sphi 0, %s43
      %s44 = sphi 0, %s41
      %s45 = sphi 0, %s44
      %s61 = sphi 0, %s45
      %s67 = sphi 0, %s69
      %s70 = sphi 0, %s67
      %s71 = sphi 0, %s70
      %s87 = sphi 0, %s71
      %s93 = sphi 0, %s95
      %s96 = sphi 0, %s93
      %s97 = sphi 0, %s96
      %s113 = sphi 0, %s97
      %s119 = sphi 0, %s121
      %s122 = sphi 0, %s119
      %s123 = sphi 0, %s122
      %s139 = sphi 0, %s123
      %s143 = sphi 0, %s143
      %s145 = sphi 0, %s143
      %s146 = sphi 0, %s145
      %s160 = sphi 0, %s146
      %s166 = sphi 0, %s168
      %s169 = sphi 0, %s166
      %s170 = sphi 0, %s169
      %s186 = sphi 0, %s170
    $region4: #{tpu_custom_call.1} parent=1 // loop_header_branch
      %22 = sbr.rel (%p20) target = $region8
    $region5: #{tpu_custom_call.1} parent=1 // loop_body
      %s24 = ssub.s32 %s19, 1
      %s25 = ssub.s32 %s19, 2
      %s32 = sadd.s32 1, %s27
      %p33 = scmp.ge.s32.totalorder %s32, 2
      %s34 = scalar_select %p33, 0, %s32
      %s35 = sadd.s32 1, %s26
      %s36 = scalar_select %p33, %s35, %s26
      %p37 = scmp.ge.s32.totalorder %s36, 1
      %s38 = scalar_select %p37, 0, %s36
      %s39 = ssub.s32 %s26, %s38
      %p40 = scmp.eq.s32.totalorder %s39, 0
      %s42 = sadd.s32 %s41, 1
      %s43 = scalar_select %p40, %s41, %s42
      %p46 = pneg %p40
      %p47 = scmp.eq.s32.totalorder %s19, 1
      %p48 = por %p46, %p47
      %p49 = scmp.ne.s32.totalorder %s41, %s44
      %p50 = scmp.eq.s32.totalorder %s19, 0
      %p51 = por %p49, %p50
      %p52 = scmp.ne.s32.totalorder %s41, %s44
      %p53 = scmp.eq.s32.totalorder %s24, 1
      %p54 = por %p52, %p53
      %p55 = scmp.ne.s32.totalorder %s44, %s45
      %p56 = scmp.eq.s32.totalorder %s24, 0
      %p57 = por %p55, %p56
      %p58 = scmp.ne.s32.totalorder %s44, %s45
      %p59 = scmp.eq.s32.totalorder %s25, 1
      %p60 = por %p58, %p59
      %p62 = scmp.ne.s32.totalorder %s45, %s61
      %p63 = scmp.eq.s32.totalorder %s25, 0
      %p64 = por %p62, %p63
      %s65 = ssub.s32 %s27, %s34
      %p66 = scmp.eq.s32.totalorder %s65, 0
      %s68 = sadd.s32 %s67, 1
      %s69 = scalar_select %p66, %s67, %s68
      %p72 = pneg %p66
      %p73 = scmp.eq.s32.totalorder %s19, 1
      %p74 = por %p72, %p73
      %p75 = scmp.ne.s32.totalorder %s67, %s70
      %p76 = scmp.eq.s32.totalorder %s19, 0
      %p77 = por %p75, %p76
      %p78 = scmp.ne.s32.totalorder %s67, %s70
      %p79 = scmp.eq.s32.totalorder %s24, 1
      %p80 = por %p78, %p79
      %p81 = scmp.ne.s32.totalorder %s70, %s71
      %p82 = scmp.eq.s32.totalorder %s24, 0
      %p83 = por %p81, %p82
      %p84 = scmp.ne.s32.totalorder %s70, %s71
      %p85 = scmp.eq.s32.totalorder %s25, 1
      %p86 = por %p84, %p85
      %p88 = scmp.ne.s32.totalorder %s71, %s87
      %p89 = scmp.eq.s32.totalorder %s25, 0
      %p90 = por %p88, %p89
      %s91 = ssub.s32 %s27, %s34
      %p92 = scmp.eq.s32.totalorder %s91, 0
      %s94 = sadd.s32 %s93, 1
      %s95 = scalar_select %p92, %s93, %s94
      %p98 = pneg %p92
      %p99 = scmp.eq.s32.totalorder %s19, 1
      %p100 = por %p98, %p99
      %p101 = scmp.ne.s32.totalorder %s93, %s96
      %p102 = scmp.eq.s32.totalorder %s19, 0
      %p103 = por %p101, %p102
      %p104 = scmp.ne.s32.totalorder %s93, %s96
      %p105 = scmp.eq.s32.totalorder %s24, 1
      %p106 = por %p104, %p105
      %p107 = scmp.ne.s32.totalorder %s96, %s97
      %p108 = scmp.eq.s32.totalorder %s24, 0
      %p109 = por %p107, %p108
      %p110 = scmp.ne.s32.totalorder %s96, %s97
      %p111 = scmp.eq.s32.totalorder %s25, 1
      %p112 = por %p110, %p111
      %p114 = scmp.ne.s32.totalorder %s97, %s113
      %p115 = scmp.eq.s32.totalorder %s25, 0
      %p116 = por %p114, %p115
      %s117 = ssub.s32 %s27, %s34
      %p118 = scmp.eq.s32.totalorder %s117, 0
      %s120 = sadd.s32 %s119, 1
      %s121 = scalar_select %p118, %s119, %s120
      %p124 = pneg %p118
      %p125 = scmp.eq.s32.totalorder %s19, 1
      %p126 = por %p124, %p125
      %p127 = scmp.ne.s32.totalorder %s119, %s122
      %p128 = scmp.eq.s32.totalorder %s19, 0
      %p129 = por %p127, %p128
      %p130 = scmp.ne.s32.totalorder %s119, %s122
      %p131 = scmp.eq.s32.totalorder %s24, 1
      %p132 = por %p130, %p131
      %p133 = scmp.ne.s32.totalorder %s122, %s123
      %p134 = scmp.eq.s32.totalorder %s24, 0
      %p135 = por %p133, %p134
      %p136 = scmp.ne.s32.totalorder %s122, %s123
      %p137 = scmp.eq.s32.totalorder %s25, 1
      %p138 = por %p136, %p137
      %p140 = scmp.ne.s32.totalorder %s123, %s139
      %p141 = scmp.eq.s32.totalorder %s25, 0
      %p142 = por %p140, %p141
      %s144 = sadd.s32 %s143, 1
      %p147 = scmp.eq.s32.totalorder %s19, 1
      %p148 = scmp.ne.s32.totalorder %s143, %s145
      %p149 = scmp.eq.s32.totalorder %s19, 0
      %p150 = por %p148, %p149
      %p151 = scmp.ne.s32.totalorder %s143, %s145
      %p152 = scmp.eq.s32.totalorder %s24, 1
      %p153 = por %p151, %p152
      %p154 = scmp.ne.s32.totalorder %s145, %s146
      %p155 = scmp.eq.s32.totalorder %s24, 0
      %p156 = por %p154, %p155
      %p157 = scmp.ne.s32.totalorder %s145, %s146
      %p158 = scmp.eq.s32.totalorder %s25, 1
      %p159 = por %p157, %p158
      %p161 = scmp.ne.s32.totalorder %s146, %s160
      %p162 = scmp.eq.s32.totalorder %s25, 0
      %p163 = por %p161, %p162
      %s164 = ssub.s32 %s26, %s38
      %p165 = scmp.eq.s32.totalorder %s164, 0
      %s167 = sadd.s32 %s166, 1
      %s168 = scalar_select %p165, %s166, %s167
      %p171 = pneg %p165
      %p172 = scmp.eq.s32.totalorder %s19, 1
      %p173 = por %p171, %p172
      %p174 = scmp.ne.s32.totalorder %s166, %s169
      %p175 = scmp.eq.s32.totalorder %s19, 0
      %p176 = por %p174, %p175
      %p177 = scmp.ne.s32.totalorder %s166, %s169
      %p178 = scmp.eq.s32.totalorder %s24, 1
      %p179 = por %p177, %p178
      %p180 = scmp.ne.s32.totalorder %s169, %s170
      %p181 = scmp.eq.s32.totalorder %s24, 0
      %p182 = por %p180, %p181
      %p183 = scmp.ne.s32.totalorder %s169, %s170
      %p184 = scmp.eq.s32.totalorder %s25, 1
      %p185 = por %p183, %p184
      %p187 = scmp.ne.s32.totalorder %s170, %s186
      %p188 = scmp.eq.s32.totalorder %s25, 0
      %p189 = por %p187, %p188
      %p190 = scmp.le.s32.totalorder 1, %s19
      %p191 = scmp.lt.s32.totalorder %s19, 3
      %p192 = pnand %p190, %p191
      %p193 = pneg %p192
      // Predicated region
      $region9: #{tpu_custom_call.1} parent=5 // pred_check
        _
      $region10: #{tpu_custom_call.1} parent=5 // pred_check_branch
        %195 = sbr.rel (%p192) target = $region12
      $region11: #{tpu_custom_call.1} parent=5 // pred_region
        %s196 = ssub.s32 %s19, 1
        // Predicated region
        $region13: #{tpu_custom_call.1} parent=11 // pred_check
          %p197 = pneg %p57
        $region14: #{tpu_custom_call.1} parent=11 // pred_check_branch
          %199 = sbr.rel (%p197) target = $region16
        $region15: #{tpu_custom_call.1} parent=11 // pred_region
          %s200 = smul.u32 16, %s28
          %202 = vsyncadd [#allocation4], 0
          %s203 = smul.addr %s200, 8
          %s204 = scalar_lea.hbm %s0, %s203
          %s205 = sshll.u32 %s204, 4
          %s206 = int_to_ptr.hbm [resolvable:$true] %s205
          %s207 = sshll.u32 [#allocation3], 4
          %s208 = int_to_ptr.vmem [resolvable:$true] %s207
          %213 = dma.hbm_to_vmem [thread:$0]  %s206, 2048, %s208, [#allocation4], 128, 128, 8
        $region16: #{tpu_custom_call.1} parent=11 // pred_fallthru
          _
        // Predicated region
        $region17: #{tpu_custom_call.1} parent=11 // pred_check
          %p214 = pneg %p156
        $region18: #{tpu_custom_call.1} parent=11 // pred_check_branch
          %216 = sbr.rel (%p214) target = $region20
        $region19: #{tpu_custom_call.1} parent=11 // pred_region
          _
        $region20: #{tpu_custom_call.1} parent=11 // pred_fallthru
          _
      $region12: #{tpu_custom_call.1} parent=5 // pred_fallthru
        _
      %p217 = scmp.lt.s32.totalorder %s19, 2
      // Predicated region
      $region21: #{tpu_custom_call.1} parent=5 // pred_check
        %p218 = pneg %p217
      $region22: #{tpu_custom_call.1} parent=5 // pred_check_branch
        %220 = sbr.rel (%p218) target = $region24
      $region23: #{tpu_custom_call.1} parent=5 // pred_region
        // Predicated region
        $region25: #{tpu_custom_call.1} parent=23 // pred_check
          %p221 = pneg %p77
        $region26: #{tpu_custom_call.1} parent=23 // pred_check_branch
          %223 = sbr.rel (%p221) target = $region28
        $region27: #{tpu_custom_call.1} parent=23 // pred_region
          %s224 = sand.u32 %s19, 1
          %s225 = scalar_lea.sflag [#allocation7], %s224
          %s226 = sand.u32 %s67, 1
          %s227 = smul.addr %s226, 128
          %s228 = scalar_lea.vmem [#allocation6], %s227
          %s229 = smul.u32 2, %s27
          %231 = vsyncadd %s225, 0
          %s232 = smul.addr %s229, 4
          %s233 = scalar_lea.hbm %s1, %s232
          %s234 = sshll.u32 %s233, 4
          %s235 = int_to_ptr.hbm [resolvable:$true] %s234
          %s236 = sshll.u32 %s228, 4
          %s237 = int_to_ptr.vmem [resolvable:$true] %s236
          %242 = dma.hbm_to_vmem [thread:$0]  %s235, 2048, %s237, %s225, 256, 128, 8
        $region28: #{tpu_custom_call.1} parent=23 // pred_fallthru
          _
        // Predicated region
        $region29: #{tpu_custom_call.1} parent=23 // pred_check
          %p243 = pneg %p103
        $region30: #{tpu_custom_call.1} parent=23 // pred_check_branch
          %245 = sbr.rel (%p243) target = $region32
        $region31: #{tpu_custom_call.1} parent=23 // pred_region
          %s246 = sand.u32 %s19, 1
          %s247 = scalar_lea.sflag [#allocation7], %s246
          %s248 = sand.u32 %s93, 1
          %s249 = smul.addr %s248, 2
          %s250 = scalar_lea.vmem [#allocation8], %s249
          %s251 = smul.u32 2, %s27
          %253 = vsyncadd %s247, 0
          %s254 = scalar_lea.hbm %s2, %s251
          %s256 = sshll.u32 %s254, 4
          %s257 = int_to_ptr.hbm [resolvable:$true] %s256
          %s258 = sshll.u32 %s250, 4
          %s259 = int_to_ptr.vmem [resolvable:$true] %s258
          %261 = dma.hbm_to_vmem [thread:$0]  %s257, 32, %s259, %s247
        $region32: #{tpu_custom_call.1} parent=23 // pred_fallthru
          _
        // Predicated region
        $region33: #{tpu_custom_call.1} parent=23 // pred_check
          %p262 = pneg %p129
        $region34: #{tpu_custom_call.1} parent=23 // pred_check_branch
          %264 = sbr.rel (%p262) target = $region36
        $region35: #{tpu_custom_call.1} parent=23 // pred_region
          %s265 = sand.u32 %s119, 1
          %s266 = scalar_lea.sflag [#allocation10], %s265
          %s267 = sand.u32 %s119, 1
          %s268 = smul.addr %s267, 128
          %s269 = scalar_lea.vmem [#allocation9], %s268
          %s270 = smul.u32 32, %s27
          %272 = vsyncadd %s266, 0
          %s273 = smul.addr %s270, 4
          %s274 = scalar_lea.hbm %s3, %s273
          %s275 = sshll.u32 %s274, 4
          %s276 = int_to_ptr.hbm [resolvable:$true] %s275
          %s277 = sshll.u32 %s269, 4
          %s278 = int_to_ptr.vmem [resolvable:$true] %s277
          %283 = dma.hbm_to_vmem [thread:$0]  %s276, 2048, %s278, %s266, 64, 64, 4
        $region36: #{tpu_custom_call.1} parent=23 // pred_fallthru
          _
      $region24: #{tpu_custom_call.1} parent=5 // pred_fallthru
        _
      %p284 = scmp.le.s32.totalorder 1, %s19
      %p285 = scmp.lt.s32.totalorder %s19, 3
      %p286 = pnand %p284, %p285
      %p287 = pneg %p286
      // Predicated region
      $region37: #{tpu_custom_call.1} parent=5 // pred_check
        _
      $region38: #{tpu_custom_call.1} parent=5 // pred_check_branch
        %289 = sbr.rel (%p286) target = $region40
      $region39: #{tpu_custom_call.1} parent=5 // pred_region
        %s290 = ssub.s32 %s19, 1
        // Predicated region
        $region41: #{tpu_custom_call.1} parent=39 // pred_check
          %p291 = pneg %p57
        $region42: #{tpu_custom_call.1} parent=39 // pred_check_branch
          %293 = sbr.rel (%p291) target = $region44
        $region43: #{tpu_custom_call.1} parent=39 // pred_region
          %295 = dma.done [#allocation4], 2048
        $region44: #{tpu_custom_call.1} parent=39 // pred_fallthru
          _
        %s296 = sand.u32 %s24, 1
        %s297 = scalar_lea.sflag [#allocation7], %s296
        %s298 = sand.u32 %s70, 1
        %s299 = smul.addr %s298, 128
        %s300 = scalar_lea.vmem [#allocation6], %s299
        // Predicated region
        $region45: #{tpu_custom_call.1} parent=39 // pred_check
          %p301 = pneg %p83
        $region46: #{tpu_custom_call.1} parent=39 // pred_check_branch
          %303 = sbr.rel (%p301) target = $region48
        $region47: #{tpu_custom_call.1} parent=39 // pred_region
          %305 = dma.done %s297, 2048
        $region48: #{tpu_custom_call.1} parent=39 // pred_fallthru
          _
        %s306 = sand.u32 %s24, 1
        %s307 = scalar_lea.sflag [#allocation7], %s306
        %s308 = sand.u32 %s96, 1
        %s309 = smul.addr %s308, 2
        %s310 = scalar_lea.vmem [#allocation8], %s309
        // Predicated region
        $region49: #{tpu_custom_call.1} parent=39 // pred_check
          %p311 = pneg %p109
        $region50: #{tpu_custom_call.1} parent=39 // pred_check_branch
          %313 = sbr.rel (%p311) target = $region52
        $region51: #{tpu_custom_call.1} parent=39 // pred_region
          %315 = dma.done %s307, 32
        $region52: #{tpu_custom_call.1} parent=39 // pred_fallthru
          _
        %s316 = sand.u32 %s122, 1
        %s317 = scalar_lea.sflag [#allocation10], %s316
        %s318 = sand.u32 %s122, 1
        %s319 = smul.addr %s318, 128
        %s320 = scalar_lea.vmem [#allocation9], %s319
        // Predicated region
        $region53: #{tpu_custom_call.1} parent=39 // pred_check
          %p321 = pneg %p135
        $region54: #{tpu_custom_call.1} parent=39 // pred_check_branch
          %323 = sbr.rel (%p321) target = $region56
        $region55: #{tpu_custom_call.1} parent=39 // pred_region
          %325 = dma.done %s317, 2048
        $region56: #{tpu_custom_call.1} parent=39 // pred_fallthru
          _
        %p326 = pneg %p57
        %p327 = pneg %p54
        %s328 = sand.u32 %s24, 1
        %s329 = scalar_lea.sflag [#allocation7], %s328
        %s330 = sand.u32 %s70, 1
        %s331 = smul.addr %s330, 128
        %s332 = scalar_lea.vmem [#allocation6], %s331
        %p333 = pneg %p83
        %p334 = pneg %p80
        %s335 = sand.u32 %s24, 1
        %s336 = scalar_lea.sflag [#allocation7], %s335
        %s337 = sand.u32 %s96, 1
        %s338 = smul.addr %s337, 2
        %s339 = scalar_lea.vmem [#allocation8], %s338
        %p340 = pneg %p109
        %p341 = pneg %p106
        %s342 = sand.u32 %s122, 1
        %s343 = scalar_lea.sflag [#allocation10], %s342
        %s344 = sand.u32 %s122, 1
        %s345 = smul.addr %s344, 128
        %s346 = scalar_lea.vmem [#allocation9], %s345
        %p347 = pneg %p135
        %p348 = pneg %p132
        %p349 = pneg %p156
        %p350 = pneg %p153
        %p351 = pneg %p182
        %p352 = pneg %p179
        %s353 = smul.u32 16, %s28
        %s354 = smul.u32 2, %s29
        %s355 = smul.u32 2, %s29
        %s356 = smul.u32 32, %s29
        %s357 = smul.u32 16, %s28
        %p358 = scmp.eq.s32.totalorder %s29, 0
        // Predicated region
        $region57: #{tpu_custom_call.1} parent=39 // pred_check
          %p359 = pneg %p358
        $region58: #{tpu_custom_call.1} parent=39 // pred_check_branch
          %361 = sbr.rel (%p359) target = $region60
        $region59: #{tpu_custom_call.1} parent=39 // pred_region
          %362 = vst [vmem:[#allocation2] sm:$0xff] 0.0
          %363 = vst [vmem:[#allocation2 + $0x8] sm:$0xff] 0.0
          %364 = vst [vmem:[#allocation2 + $0x10] sm:$0xff] 0.0
          %365 = vst [vmem:[#allocation2 + $0x18] sm:$0xff] 0.0
          %366 = vst [vmem:[#allocation2 + $0x20] sm:$0xff] 0.0
          %367 = vst [vmem:[#allocation2 + $0x28] sm:$0xff] 0.0
          %368 = vst [vmem:[#allocation2 + $0x30] sm:$0xff] 0.0
          %369 = vst [vmem:[#allocation2 + $0x38] sm:$0xff] 0.0
          %370 = vst [vmem:[#allocation2 + $0x40] sm:$0xff] 0.0
          %371 = vst [vmem:[#allocation2 + $0x48] sm:$0xff] 0.0
          %372 = vst [vmem:[#allocation2 + $0x50] sm:$0xff] 0.0
          %373 = vst [vmem:[#allocation2 + $0x58] sm:$0xff] 0.0
          %374 = vst [vmem:[#allocation2 + $0x60] sm:$0xff] 0.0
          %375 = vst [vmem:[#allocation2 + $0x68] sm:$0xff] 0.0
          %376 = vst [vmem:[#allocation2 + $0x70] sm:$0xff] 0.0
          %377 = vst [vmem:[#allocation2 + $0x78] sm:$0xff] 0.0
        $region60: #{tpu_custom_call.1} parent=39 // pred_fallthru
          _
        %v378 = vld [vmem:[#allocation3] sm:$0xff]
        %v379 = vld [vmem:[#allocation3 + $0x8] sm:$0xff]
        %v380 = vld [vmem:[#allocation3 + $0x10] sm:$0xff]
        %v381 = vld [vmem:[#allocation3 + $0x18] sm:$0xff]
        %v382 = vld [vmem:[#allocation3 + $0x20] sm:$0xff]
        %v383 = vld [vmem:[#allocation3 + $0x28] sm:$0xff]
        %v384 = vld [vmem:[#allocation3 + $0x30] sm:$0xff]
        %v385 = vld [vmem:[#allocation3 + $0x38] sm:$0xff]
        %v386 = vld [vmem:[#allocation3 + $0x40] sm:$0xff]
        %v387 = vld [vmem:[#allocation3 + $0x48] sm:$0xff]
        %v388 = vld [vmem:[#allocation3 + $0x50] sm:$0xff]
        %v389 = vld [vmem:[#allocation3 + $0x58] sm:$0xff]
        %v390 = vld [vmem:[#allocation3 + $0x60] sm:$0xff]
        %v391 = vld [vmem:[#allocation3 + $0x68] sm:$0xff]
        %v392 = vld [vmem:[#allocation3 + $0x70] sm:$0xff]
        %v393 = vld [vmem:[#allocation3 + $0x78] sm:$0xff]
        %v394 = vpack.c.bf16 %v379, %v378
        %v395 = vpack.c.bf16 %v381, %v380
        %v396 = vpack.c.bf16 %v383, %v382
        %v397 = vpack.c.bf16 %v385, %v384
        %v398 = vpack.c.bf16 %v387, %v386
        %v399 = vpack.c.bf16 %v389, %v388
        %v400 = vpack.c.bf16 %v391, %v390
        %v401 = vpack.c.bf16 %v393, %v392
        %v402 = vld [vmem:[%s300] sm:$0xff]
        %v403 = vld [vmem:[%s300 + $0x8] sm:$0xff]
        %v404 = vld [vmem:[%s300 + $0x10] sm:$0xff]
        %v405 = vld [vmem:[%s300 + $0x18] sm:$0xff]
        %v406 = vld [vmem:[%s300 + $0x20] sm:$0xff]
        %v407 = vld [vmem:[%s300 + $0x28] sm:$0xff]
        %v408 = vld [vmem:[%s300 + $0x30] sm:$0xff]
        %v409 = vld [vmem:[%s300 + $0x38] sm:$0xff]
        %v410 = vld [vmem:[%s300 + $0x40] sm:$0xff]
        %v411 = vld [vmem:[%s300 + $0x48] sm:$0xff]
        %v412 = vld [vmem:[%s300 + $0x50] sm:$0xff]
        %v413 = vld [vmem:[%s300 + $0x58] sm:$0xff]
        %v414 = vld [vmem:[%s300 + $0x60] sm:$0xff]
        %v415 = vld [vmem:[%s300 + $0x68] sm:$0xff]
        %v416 = vld [vmem:[%s300 + $0x70] sm:$0xff]
        %v417 = vld [vmem:[%s300 + $0x78] sm:$0xff]
        %v418 = vld [vmem:[%s310] sm:$0x3]
        %v420 = vperm.slane %v418, 0
        %v421 = vperm.slane %v418, 1
        %v440 = vunpack.c.l.b16 %v402
        %v441 = vunpack.c.h.b16 %v402
        %v442 = vunpack.c.l.b16 %v403
        %v443 = vunpack.c.h.b16 %v403
        %v444 = vunpack.c.l.b16 %v404
        %v445 = vunpack.c.h.b16 %v404
        %v446 = vunpack.c.l.b16 %v405
        %v447 = vunpack.c.h.b16 %v405
        %v448 = vunpack.c.l.b16 %v406
        %v449 = vunpack.c.h.b16 %v406
        %v450 = vunpack.c.l.b16 %v407
        %v451 = vunpack.c.h.b16 %v407
        %v452 = vunpack.c.l.b16 %v408
        %v453 = vunpack.c.h.b16 %v408
        %v454 = vunpack.c.l.b16 %v409
        %v455 = vunpack.c.h.b16 %v409
        %v456 = vunpack.c.l.b16 %v410
        %v457 = vunpack.c.h.b16 %v410
        %v458 = vunpack.c.l.b16 %v411
        %v459 = vunpack.c.h.b16 %v411
        %v460 = vunpack.c.l.b16 %v412
        %v461 = vunpack.c.h.b16 %v412
        %v462 = vunpack.c.l.b16 %v413
        %v463 = vunpack.c.h.b16 %v413
        %v464 = vunpack.c.l.b16 %v414
        %v465 = vunpack.c.h.b16 %v414
        %v466 = vunpack.c.l.b16 %v415
        %v467 = vunpack.c.h.b16 %v415
        %v468 = vunpack.c.l.b16 %v416
        %v469 = vunpack.c.h.b16 %v416
        %v470 = vunpack.c.l.b16 %v417
        %v471 = vunpack.c.h.b16 %v417
        %v472 = vpack.c.b16 %v442, %v440
        %v473 = vpack.c.b16 %v443, %v441
        %v474 = vpack.c.b16 %v446, %v444
        %v475 = vpack.c.b16 %v447, %v445
        %v476 = vpack.c.b16 %v450, %v448
        %v477 = vpack.c.b16 %v451, %v449
        %v478 = vpack.c.b16 %v454, %v452
        %v479 = vpack.c.b16 %v455, %v453
        %v480 = vpack.c.b16 %v458, %v456
        %v481 = vpack.c.b16 %v459, %v457
        %v482 = vpack.c.b16 %v462, %v460
        %v483 = vpack.c.b16 %v463, %v461
        %v484 = vpack.c.b16 %v466, %v464
        %v485 = vpack.c.b16 %v467, %v465
        %v486 = vpack.c.b16 %v470, %v468
        %v487 = vpack.c.b16 %v471, %v469
        %504 = vmatpush.bf16.msra.mxu0 %v486
        %505 = vmatpush.bf16.msra.mxu0 %v484
        %506 = vmatpush.bf16.msra.mxu0 %v482
        %507 = vmatpush.bf16.msra.mxu0 %v480
        %508 = vmatpush.bf16.msra.mxu0 %v478
        %509 = vmatpush.bf16.msra.mxu0 %v476
        %510 = vmatpush.bf16.msra.mxu0 %v474
        %511 = vmatpush.bf16.msra.mxu0 %v472
        %512 = vmatmul.bf16.gmra.mxu0 %v394
        %v513 = vpop.f32.mrf.mxu0
        %v514 = vadd.f32 %v420, %v513
        %v515 = vpop.f32.mrf.mxu0
        %v516 = vadd.f32 %v420, %v515
        %517 = vmatmul.bf16.gmra.mxu0 %v395
        %v518 = vpop.f32.mrf.mxu0
        %v519 = vadd.f32 %v420, %v518
        %v520 = vpop.f32.mrf.mxu0
        %v521 = vadd.f32 %v420, %v520
        %522 = vmatmul.bf16.gmra.mxu0 %v396
        %v523 = vpop.f32.mrf.mxu0
        %v524 = vadd.f32 %v420, %v523
        %v525 = vpop.f32.mrf.mxu0
        %v526 = vadd.f32 %v420, %v525
        %527 = vmatmul.bf16.gmra.mxu0 %v397
        %v528 = vpop.f32.mrf.mxu0
        %v529 = vadd.f32 %v420, %v528
        %v530 = vpop.f32.mrf.mxu0
        %v531 = vadd.f32 %v420, %v530
        %532 = vmatmul.bf16.gmra.mxu0 %v398
        %v533 = vpop.f32.mrf.mxu0
        %v534 = vadd.f32 %v420, %v533
        %v535 = vpop.f32.mrf.mxu0
        %v536 = vadd.f32 %v420, %v535
        %537 = vmatmul.bf16.gmra.mxu0 %v399
        %v538 = vpop.f32.mrf.mxu0
        %v539 = vadd.f32 %v420, %v538
        %v540 = vpop.f32.mrf.mxu0
        %v541 = vadd.f32 %v420, %v540
        %542 = vmatmul.bf16.gmra.mxu0 %v400
        %v543 = vpop.f32.mrf.mxu0
        %v544 = vadd.f32 %v420, %v543
        %v545 = vpop.f32.mrf.mxu0
        %v546 = vadd.f32 %v420, %v545
        %547 = vmatmul.bf16.gmra.mxu0 %v401
        %v548 = vpop.f32.mrf.mxu0
        %v549 = vadd.f32 %v420, %v548
        %v550 = vpop.f32.mrf.mxu0
        %v551 = vadd.f32 %v420, %v550
        %552 = vdwg.mxu0
        %553 = vmatpush.bf16.msra.mxu0 %v487
        %554 = vmatpush.bf16.msra.mxu0 %v485
        %555 = vmatpush.bf16.msra.mxu0 %v483
        %556 = vmatpush.bf16.msra.mxu0 %v481
        %557 = vmatpush.bf16.msra.mxu0 %v479
        %558 = vmatpush.bf16.msra.mxu0 %v477
        %559 = vmatpush.bf16.msra.mxu0 %v475
        %560 = vmatpush.bf16.msra.mxu0 %v473
        %561 = vmatmul.bf16.gmra.mxu0 %v394
        %v562 = vpop.f32.mrf.mxu0
        %v563 = vadd.f32 %v421, %v562
        %v564 = vpop.f32.mrf.mxu0
        %v565 = vadd.f32 %v421, %v564
        %566 = vmatmul.bf16.gmra.mxu0 %v395
        %v567 = vpop.f32.mrf.mxu0
        %v568 = vadd.f32 %v421, %v567
        %v569 = vpop.f32.mrf.mxu0
        %v570 = vadd.f32 %v421, %v569
        %571 = vmatmul.bf16.gmra.mxu0 %v396
        %v572 = vpop.f32.mrf.mxu0
        %v573 = vadd.f32 %v421, %v572
        %v574 = vpop.f32.mrf.mxu0
        %v575 = vadd.f32 %v421, %v574
        %576 = vmatmul.bf16.gmra.mxu0 %v397
        %v577 = vpop.f32.mrf.mxu0
        %v578 = vadd.f32 %v421, %v577
        %v579 = vpop.f32.mrf.mxu0
        %v580 = vadd.f32 %v421, %v579
        %581 = vmatmul.bf16.gmra.mxu0 %v398
        %v582 = vpop.f32.mrf.mxu0
        %v583 = vadd.f32 %v421, %v582
        %v584 = vpop.f32.mrf.mxu0
        %v585 = vadd.f32 %v421, %v584
        %586 = vmatmul.bf16.gmra.mxu0 %v399
        %v587 = vpop.f32.mrf.mxu0
        %v588 = vadd.f32 %v421, %v587
        %v589 = vpop.f32.mrf.mxu0
        %v590 = vadd.f32 %v421, %v589
        %591 = vmatmul.bf16.gmra.mxu0 %v400
        %v592 = vpop.f32.mrf.mxu0
        %v593 = vadd.f32 %v421, %v592
        %v594 = vpop.f32.mrf.mxu0
        %v595 = vadd.f32 %v421, %v594
        %596 = vmatmul.bf16.gmra.mxu0 %v401
        %v597 = vpop.f32.mrf.mxu0
        %v598 = vadd.f32 %v421, %v597
        %v599 = vpop.f32.mrf.mxu0
        %v600 = vadd.f32 %v421, %v599
        %601 = vdwg.mxu0
        %v602 = vmul.f32 %v514, 0.5
        %v603 = vmul.f32 %v563, 0.5
        %v604 = vmul.f32 %v516, 0.5
        %v605 = vmul.f32 %v565, 0.5
        %v606 = vmul.f32 %v519, 0.5
        %v607 = vmul.f32 %v568, 0.5
        %v608 = vmul.f32 %v521, 0.5
        %v609 = vmul.f32 %v570, 0.5
        %v610 = vmul.f32 %v524, 0.5
        %v611 = vmul.f32 %v573, 0.5
        %v612 = vmul.f32 %v526, 0.5
        %v613 = vmul.f32 %v575, 0.5
        %v614 = vmul.f32 %v529, 0.5
        %v615 = vmul.f32 %v578, 0.5
        %v616 = vmul.f32 %v531, 0.5
        %v617 = vmul.f32 %v580, 0.5
        %v618 = vmul.f32 %v534, 0.5
        %v619 = vmul.f32 %v583, 0.5
        %v620 = vmul.f32 %v536, 0.5
        %v621 = vmul.f32 %v585, 0.5
        %v622 = vmul.f32 %v539, 0.5
        %v623 = vmul.f32 %v588, 0.5
        %v624 = vmul.f32 %v541, 0.5
        %v625 = vmul.f32 %v590, 0.5
        %v626 = vmul.f32 %v544, 0.5
        %v627 = vmul.f32 %v593, 0.5
        %v628 = vmul.f32 %v546, 0.5
        %v629 = vmul.f32 %v595, 0.5
        %v630 = vmul.f32 %v549, 0.5
        %v631 = vmul.f32 %v598, 0.5
        %v632 = vmul.f32 %v551, 0.5
        %v633 = vmul.f32 %v600, 0.5
        %v634 = vmul.f32 %v514, 0.044715
        %v635 = vmul.f32 %v563, 0.044715
        %v636 = vmul.f32 %v516, 0.044715
        %v637 = vmul.f32 %v565, 0.044715
        %v638 = vmul.f32 %v519, 0.044715
        %v639 = vmul.f32 %v568, 0.044715
        %v640 = vmul.f32 %v521, 0.044715
        %v641 = vmul.f32 %v570, 0.044715
        %v642 = vmul.f32 %v524, 0.044715
        %v643 = vmul.f32 %v573, 0.044715
        %v644 = vmul.f32 %v526, 0.044715
        %v645 = vmul.f32 %v575, 0.044715
        %v646 = vmul.f32 %v529, 0.044715
        %v647 = vmul.f32 %v578, 0.044715
        %v648 = vmul.f32 %v531, 0.044715
        %v649 = vmul.f32 %v580, 0.044715
        %v650 = vmul.f32 %v534, 0.044715
        %v651 = vmul.f32 %v583, 0.044715
        %v652 = vmul.f32 %v536, 0.044715
        %v653 = vmul.f32 %v585, 0.044715
        %v654 = vmul.f32 %v539, 0.044715
        %v655 = vmul.f32 %v588, 0.044715
        %v656 = vmul.f32 %v541, 0.044715
        %v657 = vmul.f32 %v590, 0.044715
        %v658 = vmul.f32 %v544, 0.044715
        %v659 = vmul.f32 %v593, 0.044715
        %v660 = vmul.f32 %v546, 0.044715
        %v661 = vmul.f32 %v595, 0.044715
        %v662 = vmul.f32 %v549, 0.044715
        %v663 = vmul.f32 %v598, 0.044715
        %v664 = vmul.f32 %v551, 0.044715
        %v665 = vmul.f32 %v600, 0.044715
        %v666 = vmul.f32 %v634, %v514
        %v667 = vmul.f32 %v635, %v563
        %v668 = vmul.f32 %v636, %v516
        %v669 = vmul.f32 %v637, %v565
        %v670 = vmul.f32 %v638, %v519
        %v671 = vmul.f32 %v639, %v568
        %v672 = vmul.f32 %v640, %v521
        %v673 = vmul.f32 %v641, %v570
        %v674 = vmul.f32 %v642, %v524
        %v675 = vmul.f32 %v643, %v573
        %v676 = vmul.f32 %v644, %v526
        %v677 = vmul.f32 %v645, %v575
        %v678 = vmul.f32 %v646, %v529
        %v679 = vmul.f32 %v647, %v578
        %v680 = vmul.f32 %v648, %v531
        %v681 = vmul.f32 %v649, %v580
        %v682 = vmul.f32 %v650, %v534
        %v683 = vmul.f32 %v651, %v583
        %v684 = vmul.f32 %v652, %v536
        %v685 = vmul.f32 %v653, %v585
        %v686 = vmul.f32 %v654, %v539
        %v687 = vmul.f32 %v655, %v588
        %v688 = vmul.f32 %v656, %v541
        %v689 = vmul.f32 %v657, %v590
        %v690 = vmul.f32 %v658, %v544
        %v691 = vmul.f32 %v659, %v593
        %v692 = vmul.f32 %v660, %v546
        %v693 = vmul.f32 %v661, %v595
        %v694 = vmul.f32 %v662, %v549
        %v695 = vmul.f32 %v663, %v598
        %v696 = vmul.f32 %v664, %v551
        %v697 = vmul.f32 %v665, %v600
        %v698 = vmul.f32 %v666, %v514
        %v699 = vmul.f32 %v667, %v563
        %v700 = vmul.f32 %v668, %v516
        %v701 = vmul.f32 %v669, %v565
        %v702 = vmul.f32 %v670, %v519
        %v703 = vmul.f32 %v671, %v568
        %v704 = vmul.f32 %v672, %v521
        %v705 = vmul.f32 %v673, %v570
        %v706 = vmul.f32 %v674, %v524
        %v707 = vmul.f32 %v675, %v573
        %v708 = vmul.f32 %v676, %v526
        %v709 = vmul.f32 %v677, %v575
        %v710 = vmul.f32 %v678, %v529
        %v711 = vmul.f32 %v679, %v578
        %v712 = vmul.f32 %v680, %v531
        %v713 = vmul.f32 %v681, %v580
        %v714 = vmul.f32 %v682, %v534
        %v715 = vmul.f32 %v683, %v583
        %v716 = vmul.f32 %v684, %v536
        %v717 = vmul.f32 %v685, %v585
        %v718 = vmul.f32 %v686, %v539
        %v719 = vmul.f32 %v687, %v588
        %v720 = vmul.f32 %v688, %v541
        %v721 = vmul.f32 %v689, %v590
        %v722 = vmul.f32 %v690, %v544
        %v723 = vmul.f32 %v691, %v593
        %v724 = vmul.f32 %v692, %v546
        %v725 = vmul.f32 %v693, %v595
        %v726 = vmul.f32 %v694, %v549
        %v727 = vmul.f32 %v695, %v598
        %v728 = vmul.f32 %v696, %v551
        %v729 = vmul.f32 %v697, %v600
        %v730 = vadd.f32 %v514, %v698
        %v731 = vadd.f32 %v563, %v699
        %v732 = vadd.f32 %v516, %v700
        %v733 = vadd.f32 %v565, %v701
        %v734 = vadd.f32 %v519, %v702
        %v735 = vadd.f32 %v568, %v703
        %v736 = vadd.f32 %v521, %v704
        %v737 = vadd.f32 %v570, %v705
        %v738 = vadd.f32 %v524, %v706
        %v739 = vadd.f32 %v573, %v707
        %v740 = vadd.f32 %v526, %v708
        %v741 = vadd.f32 %v575, %v709
        %v742 = vadd.f32 %v529, %v710
        %v743 = vadd.f32 %v578, %v711
        %v744 = vadd.f32 %v531, %v712
        %v745 = vadd.f32 %v580, %v713
        %v746 = vadd.f32 %v534, %v714
        %v747 = vadd.f32 %v583, %v715
        %v748 = vadd.f32 %v536, %v716
        %v749 = vadd.f32 %v585, %v717
        %v750 = vadd.f32 %v539, %v718
        %v751 = vadd.f32 %v588, %v719
        %v752 = vadd.f32 %v541, %v720
        %v753 = vadd.f32 %v590, %v721
        %v754 = vadd.f32 %v544, %v722
        %v755 = vadd.f32 %v593, %v723
        %v756 = vadd.f32 %v546, %v724
        %v757 = vadd.f32 %v595, %v725
        %v758 = vadd.f32 %v549, %v726
        %v759 = vadd.f32 %v598, %v727
        %v760 = vadd.f32 %v551, %v728
        %v761 = vadd.f32 %v600, %v729
        %v762 = vmul.f32 %v730, 0.7978846
        %v763 = vmul.f32 %v731, 0.7978846
        %v764 = vmul.f32 %v732, 0.7978846
        %v765 = vmul.f32 %v733, 0.7978846
        %v766 = vmul.f32 %v734, 0.7978846
        %v767 = vmul.f32 %v735, 0.7978846
        %v768 = vmul.f32 %v736, 0.7978846
        %v769 = vmul.f32 %v737, 0.7978846
        %v770 = vmul.f32 %v738, 0.7978846
        %v771 = vmul.f32 %v739, 0.7978846
        %v772 = vmul.f32 %v740, 0.7978846
        %v773 = vmul.f32 %v741, 0.7978846
        %v774 = vmul.f32 %v742, 0.7978846
        %v775 = vmul.f32 %v743, 0.7978846
        %v776 = vmul.f32 %v744, 0.7978846
        %v777 = vmul.f32 %v745, 0.7978846
        %v778 = vmul.f32 %v746, 0.7978846
        %v779 = vmul.f32 %v747, 0.7978846
        %v780 = vmul.f32 %v748, 0.7978846
        %v781 = vmul.f32 %v749, 0.7978846
        %v782 = vmul.f32 %v750, 0.7978846
        %v783 = vmul.f32 %v751, 0.7978846
        %v784 = vmul.f32 %v752, 0.7978846
        %v785 = vmul.f32 %v753, 0.7978846
        %v786 = vmul.f32 %v754, 0.7978846
        %v787 = vmul.f32 %v755, 0.7978846
        %v788 = vmul.f32 %v756, 0.7978846
        %v789 = vmul.f32 %v757, 0.7978846
        %v790 = vmul.f32 %v758, 0.7978846
        %v791 = vmul.f32 %v759, 0.7978846
        %v792 = vmul.f32 %v760, 0.7978846
        %v793 = vmul.f32 %v761, 0.7978846
        %v794 = vtanh.pop %v762
        %v795 = vtanh.pop %v763
        %v796 = vtanh.pop %v764
        %v797 = vtanh.pop %v765
        %v798 = vtanh.pop %v766
        %v799 = vtanh.pop %v767
        %v800 = vtanh.pop %v768
        %v801 = vtanh.pop %v769
        %v802 = vtanh.pop %v770
        %v803 = vtanh.pop %v771
        %v804 = vtanh.pop %v772
        %v805 = vtanh.pop %v773
        %v806 = vtanh.pop %v774
        %v807 = vtanh.pop %v775
        %v808 = vtanh.pop %v776
        %v809 = vtanh.pop %v777
        %v810 = vtanh.pop %v778
        %v811 = vtanh.pop %v779
        %v812 = vtanh.pop %v780
        %v813 = vtanh.pop %v781
        %v814 = vtanh.pop %v782
        %v815 = vtanh.pop %v783
        %v816 = vtanh.pop %v784
        %v817 = vtanh.pop %v785
        %v818 = vtanh.pop %v786
        %v819 = vtanh.pop %v787
        %v820 = vtanh.pop %v788
        %v821 = vtanh.pop %v789
        %v822 = vtanh.pop %v790
        %v823 = vtanh.pop %v791
        %v824 = vtanh.pop %v792
        %v825 = vtanh.pop %v793
        %v826 = vadd.f32 %v794, 1.0
        %v827 = vadd.f32 %v795, 1.0
        %v828 = vadd.f32 %v796, 1.0
        %v829 = vadd.f32 %v797, 1.0
        %v830 = vadd.f32 %v798, 1.0
        %v831 = vadd.f32 %v799, 1.0
        %v832 = vadd.f32 %v800, 1.0
        %v833 = vadd.f32 %v801, 1.0
        %v834 = vadd.f32 %v802, 1.0
        %v835 = vadd.f32 %v803, 1.0
        %v836 = vadd.f32 %v804, 1.0
        %v837 = vadd.f32 %v805, 1.0
        %v838 = vadd.f32 %v806, 1.0
        %v839 = vadd.f32 %v807, 1.0
        %v840 = vadd.f32 %v808, 1.0
        %v841 = vadd.f32 %v809, 1.0
        %v842 = vadd.f32 %v810, 1.0
        %v843 = vadd.f32 %v811, 1.0
        %v844 = vadd.f32 %v812, 1.0
        %v845 = vadd.f32 %v813, 1.0
        %v846 = vadd.f32 %v814, 1.0
        %v847 = vadd.f32 %v815, 1.0
        %v848 = vadd.f32 %v816, 1.0
        %v849 = vadd.f32 %v817, 1.0
        %v850 = vadd.f32 %v818, 1.0
        %v851 = vadd.f32 %v819, 1.0
        %v852 = vadd.f32 %v820, 1.0
        %v853 = vadd.f32 %v821, 1.0
        %v854 = vadd.f32 %v822, 1.0
        %v855 = vadd.f32 %v823, 1.0
        %v856 = vadd.f32 %v824, 1.0
        %v857 = vadd.f32 %v825, 1.0
        %v858 = vmul.f32 %v602, %v826
        %v859 = vmul.f32 %v603, %v827
        %v860 = vmul.f32 %v604, %v828
        %v861 = vmul.f32 %v605, %v829
        %v862 = vmul.f32 %v606, %v830
        %v863 = vmul.f32 %v607, %v831
        %v864 = vmul.f32 %v608, %v832
        %v865 = vmul.f32 %v609, %v833
        %v866 = vmul.f32 %v610, %v834
        %v867 = vmul.f32 %v611, %v835
        %v868 = vmul.f32 %v612, %v836
        %v869 = vmul.f32 %v613, %v837
        %v870 = vmul.f32 %v614, %v838
        %v871 = vmul.f32 %v615, %v839
        %v872 = vmul.f32 %v616, %v840
        %v873 = vmul.f32 %v617, %v841
        %v874 = vmul.f32 %v618, %v842
        %v875 = vmul.f32 %v619, %v843
        %v876 = vmul.f32 %v620, %v844
        %v877 = vmul.f32 %v621, %v845
        %v878 = vmul.f32 %v622, %v846
        %v879 = vmul.f32 %v623, %v847
        %v880 = vmul.f32 %v624, %v848
        %v881 = vmul.f32 %v625, %v849
        %v882 = vmul.f32 %v626, %v850
        %v883 = vmul.f32 %v627, %v851
        %v884 = vmul.f32 %v628, %v852
        %v885 = vmul.f32 %v629, %v853
        %v886 = vmul.f32 %v630, %v854
        %v887 = vmul.f32 %v631, %v855
        %v888 = vmul.f32 %v632, %v856
        %v889 = vmul.f32 %v633, %v857
        %v890 = vld [vmem:[#allocation2] sm:$0xff]
        %v891 = vld [vmem:[#allocation2 + $0x8] sm:$0xff]
        %v892 = vld [vmem:[#allocation2 + $0x10] sm:$0xff]
        %v893 = vld [vmem:[#allocation2 + $0x18] sm:$0xff]
        %v894 = vld [vmem:[#allocation2 + $0x20] sm:$0xff]
        %v895 = vld [vmem:[#allocation2 + $0x28] sm:$0xff]
        %v896 = vld [vmem:[#allocation2 + $0x30] sm:$0xff]
        %v897 = vld [vmem:[#allocation2 + $0x38] sm:$0xff]
        %v898 = vld [vmem:[#allocation2 + $0x40] sm:$0xff]
        %v899 = vld [vmem:[#allocation2 + $0x48] sm:$0xff]
        %v900 = vld [vmem:[#allocation2 + $0x50] sm:$0xff]
        %v901 = vld [vmem:[#allocation2 + $0x58] sm:$0xff]
        %v902 = vld [vmem:[#allocation2 + $0x60] sm:$0xff]
        %v903 = vld [vmem:[#allocation2 + $0x68] sm:$0xff]
        %v904 = vld [vmem:[#allocation2 + $0x70] sm:$0xff]
        %v905 = vld [vmem:[#allocation2 + $0x78] sm:$0xff]
        %v906 = vpack.c.bf16 %v860, %v858
        %v907 = vpack.c.bf16 %v861, %v859
        %v908 = vpack.c.bf16 %v864, %v862
        %v909 = vpack.c.bf16 %v865, %v863
        %v910 = vpack.c.bf16 %v868, %v866
        %v911 = vpack.c.bf16 %v869, %v867
        %v912 = vpack.c.bf16 %v872, %v870
        %v913 = vpack.c.bf16 %v873, %v871
        %v914 = vpack.c.bf16 %v876, %v874
        %v915 = vpack.c.bf16 %v877, %v875
        %v916 = vpack.c.bf16 %v880, %v878
        %v917 = vpack.c.bf16 %v881, %v879
        %v918 = vpack.c.bf16 %v884, %v882
        %v919 = vpack.c.bf16 %v885, %v883
        %v920 = vpack.c.bf16 %v888, %v886
        %v921 = vpack.c.bf16 %v889, %v887
        %v922 = vld [vmem:[%s320] sm:$0xf]
        %v923 = vld [vmem:[%s320 + $0x4] sm:$0xf]
        %v924 = vld [vmem:[%s320 + $0x8] sm:$0xf]
        %v925 = vld [vmem:[%s320 + $0xc] sm:$0xf]
        %v926 = vld [vmem:[%s320 + $0x10] sm:$0xf]
        %v927 = vld [vmem:[%s320 + $0x14] sm:$0xf]
        %v928 = vld [vmem:[%s320 + $0x18] sm:$0xf]
        %v929 = vld [vmem:[%s320 + $0x1c] sm:$0xf]
        %v930 = vld [vmem:[%s320 + $0x20] sm:$0xf]
        %v931 = vld [vmem:[%s320 + $0x24] sm:$0xf]
        %v932 = vld [vmem:[%s320 + $0x28] sm:$0xf]
        %v933 = vld [vmem:[%s320 + $0x2c] sm:$0xf]
        %v934 = vld [vmem:[%s320 + $0x30] sm:$0xf]
        %v935 = vld [vmem:[%s320 + $0x34] sm:$0xf]
        %v936 = vld [vmem:[%s320 + $0x38] sm:$0xf]
        %v937 = vld [vmem:[%s320 + $0x3c] sm:$0xf]
        %v938 = vld [vmem:[%s320 + $0x40] sm:$0xf]
        %v939 = vld [vmem:[%s320 + $0x44] sm:$0xf]
        %v940 = vld [vmem:[%s320 + $0x48] sm:$0xf]
        %v941 = vld [vmem:[%s320 + $0x4c] sm:$0xf]
        %v942 = vld [vmem:[%s320 + $0x50] sm:$0xf]
        %v943 = vld [vmem:[%s320 + $0x54] sm:$0xf]
        %v944 = vld [vmem:[%s320 + $0x58] sm:$0xf]
        %v945 = vld [vmem:[%s320 + $0x5c] sm:$0xf]
        %v946 = vld [vmem:[%s320 + $0x60] sm:$0xf]
        %v947 = vld [vmem:[%s320 + $0x64] sm:$0xf]
        %v948 = vld [vmem:[%s320 + $0x68] sm:$0xf]
        %v949 = vld [vmem:[%s320 + $0x6c] sm:$0xf]
        %v950 = vld [vmem:[%s320 + $0x70] sm:$0xf]
        %v951 = vld [vmem:[%s320 + $0x74] sm:$0xf]
        %v952 = vld [vmem:[%s320 + $0x78] sm:$0xf]
        %v953 = vld [vmem:[%s320 + $0x7c] sm:$0xf]
        %v986 = vunpack.c.l.b16 %v922
        %v987 = vunpack.c.l.b16 %v923
        %v988 = vunpack.c.l.b16 %v924
        %v989 = vunpack.c.l.b16 %v925
        %v990 = vunpack.c.l.b16 %v926
        %v991 = vunpack.c.l.b16 %v927
        %v992 = vunpack.c.l.b16 %v928
        %v993 = vunpack.c.l.b16 %v929
        %v994 = vunpack.c.l.b16 %v930
        %v995 = vunpack.c.l.b16 %v931
        %v996 = vunpack.c.l.b16 %v932
        %v997 = vunpack.c.l.b16 %v933
        %v998 = vunpack.c.l.b16 %v934
        %v999 = vunpack.c.l.b16 %v935
        %v1000 = vunpack.c.l.b16 %v936
        %v1001 = vunpack.c.l.b16 %v937
        %v1002 = vunpack.c.l.b16 %v938
        %v1003 = vunpack.c.l.b16 %v939
        %v1004 = vunpack.c.l.b16 %v940
        %v1005 = vunpack.c.l.b16 %v941
        %v1006 = vunpack.c.l.b16 %v942
        %v1007 = vunpack.c.l.b16 %v943
        %v1008 = vunpack.c.l.b16 %v944
        %v1009 = vunpack.c.l.b16 %v945
        %v1010 = vunpack.c.l.b16 %v946
        %v1011 = vunpack.c.l.b16 %v947
        %v1012 = vunpack.c.l.b16 %v948
        %v1013 = vunpack.c.l.b16 %v949
        %v1014 = vunpack.c.l.b16 %v950
        %v1015 = vunpack.c.l.b16 %v951
        %v1016 = vunpack.c.l.b16 %v952
        %v1017 = vunpack.c.l.b16 %v953
        %v1018 = vpack.c.b16 %v987, %v986
        %v1019 = vpack.c.b16 %v989, %v988
        %v1020 = vpack.c.b16 %v991, %v990
        %v1021 = vpack.c.b16 %v993, %v992
        %v1022 = vpack.c.b16 %v995, %v994
        %v1023 = vpack.c.b16 %v997, %v996
        %v1024 = vpack.c.b16 %v999, %v998
        %v1025 = vpack.c.b16 %v1001, %v1000
        %v1026 = vpack.c.b16 %v1003, %v1002
        %v1027 = vpack.c.b16 %v1005, %v1004
        %v1028 = vpack.c.b16 %v1007, %v1006
        %v1029 = vpack.c.b16 %v1009, %v1008
        %v1030 = vpack.c.b16 %v1011, %v1010
        %v1031 = vpack.c.b16 %v1013, %v1012
        %v1032 = vpack.c.b16 %v1015, %v1014
        %v1033 = vpack.c.b16 %v1017, %v1016
        %1050 = vmatpush.bf16.msra.mxu0 %v1025
        %1051 = vmatpush.bf16.msra.mxu0 %v1024
        %1052 = vmatpush.bf16.msra.mxu0 %v1023
        %1053 = vmatpush.bf16.msra.mxu0 %v1022
        %1054 = vmatpush.bf16.msra.mxu0 %v1021
        %1055 = vmatpush.bf16.msra.mxu0 %v1020
        %1056 = vmatpush.bf16.msra.mxu0 %v1019
        %1057 = vmatpush.bf16.msra.mxu0 %v1018
        %1058 = vmatmul.bf16.gmra.mxu0 %v906
        %v1059 = vpop.f32.mrf.mxu0
        %v1060 = vadd.f32 0.0, %v1059
        %v1061 = vpop.f32.mrf.mxu0
        %v1062 = vadd.f32 0.0, %v1061
        %1063 = vmatmul.bf16.gmra.mxu0 %v908
        %v1064 = vpop.f32.mrf.mxu0
        %v1065 = vadd.f32 0.0, %v1064
        %v1066 = vpop.f32.mrf.mxu0
        %v1067 = vadd.f32 0.0, %v1066
        %1068 = vmatmul.bf16.gmra.mxu0 %v910
        %v1069 = vpop.f32.mrf.mxu0
        %v1070 = vadd.f32 0.0, %v1069
        %v1071 = vpop.f32.mrf.mxu0
        %v1072 = vadd.f32 0.0, %v1071
        %1073 = vmatmul.bf16.gmra.mxu0 %v912
        %v1074 = vpop.f32.mrf.mxu0
        %v1075 = vadd.f32 0.0, %v1074
        %v1076 = vpop.f32.mrf.mxu0
        %v1077 = vadd.f32 0.0, %v1076
        %1078 = vmatmul.bf16.gmra.mxu0 %v914
        %v1079 = vpop.f32.mrf.mxu0
        %v1080 = vadd.f32 0.0, %v1079
        %v1081 = vpop.f32.mrf.mxu0
        %v1082 = vadd.f32 0.0, %v1081
        %1083 = vmatmul.bf16.gmra.mxu0 %v916
        %v1084 = vpop.f32.mrf.mxu0
        %v1085 = vadd.f32 0.0, %v1084
        %v1086 = vpop.f32.mrf.mxu0
        %v1087 = vadd.f32 0.0, %v1086
        %1088 = vmatmul.bf16.gmra.mxu0 %v918
        %v1089 = vpop.f32.mrf.mxu0
        %v1090 = vadd.f32 0.0, %v1089
        %v1091 = vpop.f32.mrf.mxu0
        %v1092 = vadd.f32 0.0, %v1091
        %1093 = vmatmul.bf16.gmra.mxu0 %v920
        %v1094 = vpop.f32.mrf.mxu0
        %v1095 = vadd.f32 0.0, %v1094
        %v1096 = vpop.f32.mrf.mxu0
        %v1097 = vadd.f32 0.0, %v1096
        %1098 = vdwg.mxu0
        %1099 = vmatpush.bf16.msra.mxu0 %v1033
        %1100 = vmatpush.bf16.msra.mxu0 %v1032
        %1101 = vmatpush.bf16.msra.mxu0 %v1031
        %1102 = vmatpush.bf16.msra.mxu0 %v1030
        %1103 = vmatpush.bf16.msra.mxu0 %v1029
        %1104 = vmatpush.bf16.msra.mxu0 %v1028
        %1105 = vmatpush.bf16.msra.mxu0 %v1027
        %1106 = vmatpush.bf16.msra.mxu0 %v1026
        %1107 = vmatmul.bf16.gmra.mxu0 %v907
        %v1108 = vpop.f32.mrf.mxu0
        %v1109 = vadd.f32 %v1060, %v1108
        %v1110 = vpop.f32.mrf.mxu0
        %v1111 = vadd.f32 %v1062, %v1110
        %1112 = vmatmul.bf16.gmra.mxu0 %v909
        %v1113 = vpop.f32.mrf.mxu0
        %v1114 = vadd.f32 %v1065, %v1113
        %v1115 = vpop.f32.mrf.mxu0
        %v1116 = vadd.f32 %v1067, %v1115
        %1117 = vmatmul.bf16.gmra.mxu0 %v911
        %v1118 = vpop.f32.mrf.mxu0
        %v1119 = vadd.f32 %v1070, %v1118
        %v1120 = vpop.f32.mrf.mxu0
        %v1121 = vadd.f32 %v1072, %v1120
        %1122 = vmatmul.bf16.gmra.mxu0 %v913
        %v1123 = vpop.f32.mrf.mxu0
        %v1124 = vadd.f32 %v1075, %v1123
        %v1125 = vpop.f32.mrf.mxu0
        %v1126 = vadd.f32 %v1077, %v1125
        %1127 = vmatmul.bf16.gmra.mxu0 %v915
        %v1128 = vpop.f32.mrf.mxu0
        %v1129 = vadd.f32 %v1080, %v1128
        %v1130 = vpop.f32.mrf.mxu0
        %v1131 = vadd.f32 %v1082, %v1130
        %1132 = vmatmul.bf16.gmra.mxu0 %v917
        %v1133 = vpop.f32.mrf.mxu0
        %v1134 = vadd.f32 %v1085, %v1133
        %v1135 = vpop.f32.mrf.mxu0
        %v1136 = vadd.f32 %v1087, %v1135
        %1137 = vmatmul.bf16.gmra.mxu0 %v919
        %v1138 = vpop.f32.mrf.mxu0
        %v1139 = vadd.f32 %v1090, %v1138
        %v1140 = vpop.f32.mrf.mxu0
        %v1141 = vadd.f32 %v1092, %v1140
        %1142 = vmatmul.bf16.gmra.mxu0 %v921
        %v1143 = vpop.f32.mrf.mxu0
        %v1144 = vadd.f32 %v1095, %v1143
        %v1145 = vpop.f32.mrf.mxu0
        %v1146 = vadd.f32 %v1097, %v1145
        %1147 = vdwg.mxu0
        %v1148 = vadd.f32 %v890, %v1109
        %v1149 = vadd.f32 %v891, %v1111
        %v1150 = vadd.f32 %v892, %v1114
        %v1151 = vadd.f32 %v893, %v1116
        %v1152 = vadd.f32 %v894, %v1119
        %v1153 = vadd.f32 %v895, %v1121
        %v1154 = vadd.f32 %v896, %v1124
        %v1155 = vadd.f32 %v897, %v1126
        %v1156 = vadd.f32 %v898, %v1129
        %v1157 = vadd.f32 %v899, %v1131
        %v1158 = vadd.f32 %v900, %v1134
        %v1159 = vadd.f32 %v901, %v1136
        %v1160 = vadd.f32 %v902, %v1139
        %v1161 = vadd.f32 %v903, %v1141
        %v1162 = vadd.f32 %v904, %v1144
        %v1163 = vadd.f32 %v905, %v1146
        %1164 = vst [vmem:[#allocation2] sm:$0xff] %v1148
        %1165 = vst [vmem:[#allocation2 + $0x8] sm:$0xff] %v1149
        %1166 = vst [vmem:[#allocation2 + $0x10] sm:$0xff] %v1150
        %1167 = vst [vmem:[#allocation2 + $0x18] sm:$0xff] %v1151
        %1168 = vst [vmem:[#allocation2 + $0x20] sm:$0xff] %v1152
        %1169 = vst [vmem:[#allocation2 + $0x28] sm:$0xff] %v1153
        %1170 = vst [vmem:[#allocation2 + $0x30] sm:$0xff] %v1154
        %1171 = vst [vmem:[#allocation2 + $0x38] sm:$0xff] %v1155
        %1172 = vst [vmem:[#allocation2 + $0x40] sm:$0xff] %v1156
        %1173 = vst [vmem:[#allocation2 + $0x48] sm:$0xff] %v1157
        %1174 = vst [vmem:[#allocation2 + $0x50] sm:$0xff] %v1158
        %1175 = vst [vmem:[#allocation2 + $0x58] sm:$0xff] %v1159
        %1176 = vst [vmem:[#allocation2 + $0x60] sm:$0xff] %v1160
        %1177 = vst [vmem:[#allocation2 + $0x68] sm:$0xff] %v1161
        %1178 = vst [vmem:[#allocation2 + $0x70] sm:$0xff] %v1162
        %1179 = vst [vmem:[#allocation2 + $0x78] sm:$0xff] %v1163
        %p1180 = scmp.eq.s32.totalorder %s29, 1
        // Predicated region
        $region61: #{tpu_custom_call.1} parent=39 // pred_check
          %p1181 = pneg %p1180
        $region62: #{tpu_custom_call.1} parent=39 // pred_check_branch
          %1183 = sbr.rel (%p1181) target = $region64
        $region63: #{tpu_custom_call.1} parent=39 // pred_region
          %v1184 = vld [vmem:[#allocation2] sm:$0xff]
          %v1185 = vld [vmem:[#allocation2 + $0x8] sm:$0xff]
          %v1186 = vld [vmem:[#allocation2 + $0x10] sm:$0xff]
          %v1187 = vld [vmem:[#allocation2 + $0x18] sm:$0xff]
          %v1188 = vld [vmem:[#allocation2 + $0x20] sm:$0xff]
          %v1189 = vld [vmem:[#allocation2 + $0x28] sm:$0xff]
          %v1190 = vld [vmem:[#allocation2 + $0x30] sm:$0xff]
          %v1191 = vld [vmem:[#allocation2 + $0x38] sm:$0xff]
          %v1192 = vld [vmem:[#allocation2 + $0x40] sm:$0xff]
          %v1193 = vld [vmem:[#allocation2 + $0x48] sm:$0xff]
          %v1194 = vld [vmem:[#allocation2 + $0x50] sm:$0xff]
          %v1195 = vld [vmem:[#allocation2 + $0x58] sm:$0xff]
          %v1196 = vld [vmem:[#allocation2 + $0x60] sm:$0xff]
          %v1197 = vld [vmem:[#allocation2 + $0x68] sm:$0xff]
          %v1198 = vld [vmem:[#allocation2 + $0x70] sm:$0xff]
          %v1199 = vld [vmem:[#allocation2 + $0x78] sm:$0xff]
          %v1200 = vld [vmem:[%s4] sm:$0x1]
          %v1202 = vperm.slane %v1200, 0
          %v1204 = vadd.f32 %v1184, %v1202
          %v1205 = vadd.f32 %v1185, %v1202
          %v1206 = vadd.f32 %v1186, %v1202
          %v1207 = vadd.f32 %v1187, %v1202
          %v1208 = vadd.f32 %v1188, %v1202
          %v1209 = vadd.f32 %v1189, %v1202
          %v1210 = vadd.f32 %v1190, %v1202
          %v1211 = vadd.f32 %v1191, %v1202
          %v1212 = vadd.f32 %v1192, %v1202
          %v1213 = vadd.f32 %v1193, %v1202
          %v1214 = vadd.f32 %v1194, %v1202
          %v1215 = vadd.f32 %v1195, %v1202
          %v1216 = vadd.f32 %v1196, %v1202
          %v1217 = vadd.f32 %v1197, %v1202
          %v1218 = vadd.f32 %v1198, %v1202
          %v1219 = vadd.f32 %v1199, %v1202
          %1220 = vst [vmem:[#allocation11] sm:$0xff] %v1204
          %1221 = vst [vmem:[#allocation11 + $0x8] sm:$0xff] %v1205
          %1222 = vst [vmem:[#allocation11 + $0x10] sm:$0xff] %v1206
          %1223 = vst [vmem:[#allocation11 + $0x18] sm:$0xff] %v1207
          %1224 = vst [vmem:[#allocation11 + $0x20] sm:$0xff] %v1208
          %1225 = vst [vmem:[#allocation11 + $0x28] sm:$0xff] %v1209
          %1226 = vst [vmem:[#allocation11 + $0x30] sm:$0xff] %v1210
          %1227 = vst [vmem:[#allocation11 + $0x38] sm:$0xff] %v1211
          %1228 = vst [vmem:[#allocation11 + $0x40] sm:$0xff] %v1212
          %1229 = vst [vmem:[#allocation11 + $0x48] sm:$0xff] %v1213
          %1230 = vst [vmem:[#allocation11 + $0x50] sm:$0xff] %v1214
          %1231 = vst [vmem:[#allocation11 + $0x58] sm:$0xff] %v1215
          %1232 = vst [vmem:[#allocation11 + $0x60] sm:$0xff] %v1216
          %1233 = vst [vmem:[#allocation11 + $0x68] sm:$0xff] %v1217
          %1234 = vst [vmem:[#allocation11 + $0x70] sm:$0xff] %v1218
          %1235 = vst [vmem:[#allocation11 + $0x78] sm:$0xff] %v1219
        $region64: #{tpu_custom_call.1} parent=39 // pred_fallthru
          _
        // Predicated region
        $region65: #{tpu_custom_call.1} parent=39 // pred_check
          %p1236 = pneg %p179
        $region66: #{tpu_custom_call.1} parent=39 // pred_check_branch
          %1238 = sbr.rel (%p1236) target = $region68
        $region67: #{tpu_custom_call.1} parent=39 // pred_region
          %s1239 = smul.u32 16, %s28
          %1241 = vsyncadd [#allocation5], 0
          %s1242 = smul.addr %s1239, 8
          %s1243 = scalar_lea.hbm %s5, %s1242
          %s1244 = sshll.u32 [#allocation11], 4
          %s1245 = int_to_ptr.vmem [resolvable:$true] %s1244
          %s1246 = sshll.u32 %s1243, 4
          %s1247 = int_to_ptr.hbm [resolvable:$true] %s1246
          %1252 = dma.vmem_to_hbm [thread:$0]  %s1245, 2048, %s1247, [#allocation5], 128, 128, 8
        $region68: #{tpu_custom_call.1} parent=39 // pred_fallthru
          _
        // Predicated region
        $region69: #{tpu_custom_call.1} parent=39 // pred_check
          %p1253 = pneg %p179
        $region70: #{tpu_custom_call.1} parent=39 // pred_check_branch
          %1255 = sbr.rel (%p1253) target = $region72
        $region71: #{tpu_custom_call.1} parent=39 // pred_region
          %1257 = dma.done [#allocation5], 2048
        $region72: #{tpu_custom_call.1} parent=39 // pred_fallthru
          _
      $region40: #{tpu_custom_call.1} parent=5 // pred_fallthru
        _
      %p1258 = scmp.le.s32.totalorder 2, %s19
      // Predicated region
      $region73: #{tpu_custom_call.1} parent=5 // pred_check
        %p1259 = pneg %p1258
      $region74: #{tpu_custom_call.1} parent=5 // pred_check_branch
        %1261 = sbr.rel (%p1259) target = $region76
      $region75: #{tpu_custom_call.1} parent=5 // pred_region
        %s1262 = ssub.s32 %s19, 2
      $region76: #{tpu_custom_call.1} parent=5 // pred_fallthru
        _
    $region6: #{tpu_custom_call.1} parent=1 // loop_footer
      %s23 = sadd.s32 1, %s19
    $region7: #{tpu_custom_call.1} parent=1 // loop_footer_branch
      %18 = sbr.rel target = $region3
    $region8: #{tpu_custom_call.1} parent=1 // loop_exit
      _
    %1263 = vsyncpa [#allocation4], 1
    %s1264 = scalar_lea.sflag [#allocation4], 1
    %1265 = vsyncpa %s1264, 1
    %1266 = vsyncpa [#allocation7], 1
    %s1267 = scalar_lea.sflag [#allocation7], 1
    %1268 = vsyncpa %s1267, 1
    %1269 = vsyncpa [#allocation10], 1
    %s1270 = scalar_lea.sflag [#allocation10], 1
    %1271 = vsyncpa %s1270, 1
    %1272 = vsyncpa [#allocation5], 1
    %s1273 = scalar_lea.sflag [#allocation5], 1
    %1274 = vsyncpa %s1273, 1

</llo_original>
